<compile_context>
chip_gen: v7x
topology: tpu7x:2x2x1
jax: 0.10.0
libtpu: 0.0.40
codegen_flags: <defaults>
</compile_context>

<pallas_src>
import math
from functools import lru_cache, partial

import numpy as np
import jax
import jax.numpy as jnp
from jax.experimental import pallas as pl
from jax.experimental.pallas import tpu as pltpu

# Deterministic in-script "config" (TRANS_CFG equivalent), scaled down so the
# example shapes stay small while exercising every branch of the module.
TRANS_CFG = {
    "min_size": 32,
    "max_size": 64,
    "img_mean": [0.485, 0.456, 0.406],
    "img_std": [0.229, 0.224, 0.225],
}


class ImageList:
    """Batched tensor + per-image (unpadded) sizes, like torchvision ImageList."""

    def __init__(self, tensors, image_sizes):
        self.tensors = tensors
        self.image_sizes = image_sizes


# ---------------------------------------------------------------------------
# Pallas kernel: per-output-row-tile fused normalize + bilinear resize + pad,
# written straight into the image's slot of the batched output.
# ---------------------------------------------------------------------------
def _norm_resize_tile_kernel(scale_ref, bias_ref, x_ref, wy_ref, wxt_ref,
                             batch_ref, o_ref, *, chans, tile_h, out_h, out_w):
    """scale_ref/bias_ref : (C,)                 f32 SMEM  (1/std, -mean/std)
       x_ref              : (C, H, W)            f32 VMEM  full image, resident
       wy_ref             : (tile_h, H)          f32 VMEM  row-interp rows of this tile
       wxt_ref            : (W, padW)            f32 VMEM  col-interp (transposed), resident
       batch_ref          : (B, C, padH, padW)   f32 HBM   aliased output, never read
       o_ref              : (1, C, tile_h, padW) f32 VMEM  this tile of this image's slot
    """
    del batch_ref  # aliased to the output buffer; only present for in-place batching

    pad_w = o_ref.shape[-1]
    row0 = pl.program_id(0) * tile_h
    rows = jax.lax.broadcasted_iota(jnp.int32, (tile_h, pad_w), 0) + row0
    cols = jax.lax.broadcasted_iota(jnp.int32, (tile_h, pad_w), 1)
    # Bias only applies inside the valid (out_h, out_w) window; padding stays 0
    # (the interp matrices are already zero on pad rows / cols).
    valid = ((rows < out_h) & (cols < out_w)).astype(jnp.float32)

    wy = wy_ref[...]
    wxt = wxt_ref[...]
    for c in range(chans):                       # static unroll; C is tiny
        t = jnp.dot(wy, x_ref[c], preferred_element_type=jnp.float32)   # (tile_h, W)
        r = jnp.dot(t, wxt, preferred_element_type=jnp.float32)         # (tile_h, padW)
        o_ref[0, c] = r * scale_ref[c] + bias_ref[c] * valid


# ---------------------------------------------------------------------------
# Host glue: interpolation matrices, tile sizing, cached pallas_call builders
# ---------------------------------------------------------------------------
def _bilinear_matrix_np(out_size, in_size):
    """M (out, in) so that resized = M @ signal.  Matches
    torch.nn.functional.interpolate(mode='bilinear', align_corners=False)."""
    i = np.arange(out_size, dtype=np.float64)
    src = (i + 0.5) * (float(in_size) / float(out_size)) - 0.5
    src = np.clip(src, 0.0, float(in_size - 1))
    lo = np.floor(src)
    w_hi = (src - lo).astype(np.float32)
    lo_i = lo.astype(np.int64)
    hi_i = np.minimum(lo_i + 1, in_size - 1)
    m = np.zeros((out_size, in_size), dtype=np.float32)
    rows = np.arange(out_size)
    m[rows, lo_i] += (1.0 - w_hi)
    m[rows, hi_i] += w_hi
    return m


@lru_cache(maxsize=None)
def _interp_matrices(in_h, in_w, out_h, out_w, pad_h, pad_w):
    """f32 interp matrices padded to the batched output size (pad region zero)."""
    wy = np.zeros((pad_h, in_h), dtype=np.float32)
    wy[:out_h, :] = _bilinear_matrix_np(out_h, in_h)
    wxt = np.zeros((in_w, pad_w), dtype=np.float32)
    wxt[:, :out_w] = _bilinear_matrix_np(out_w, in_w).T
    return jnp.asarray(wy), jnp.asarray(wxt)


def _pick_tile_h(pad_h):
    # pad_h is always a multiple of 32 (batch_images stride); cap the tile at
    # 256 rows per step so the block working set stays small on v5e / v7x.
    for t in (256, 128, 64, 32, 16, 8):
        if t <= pad_h and pad_h % t == 0:
            return t
    return pad_h


def _vmem_limit_bytes(chans, in_h, in_w, tile_h, pad_w):
    f32 = 4
    img = chans * in_h * in_w * f32            # resident input image
    wy = tile_h * in_h * f32                   # per-tile Wy rows
    wxt = in_w * pad_w * f32                   # resident Wx^T
    otile = chans * tile_h * pad_w * f32       # per-tile output block
    temps = tile_h * (in_w + pad_w) * f32      # per-channel matmul temporaries
    need = 2 * (img + wy + wxt + otile) + temps   # double-buffered pipeline
    return int(min(max(2 * need, 4 << 20), 64 << 20))


@lru_cache(maxsize=None)
def _build_norm_resize_into_slot(batch, max_c, slot, chans, in_h, in_w,
                                 out_h, out_w, pad_h, pad_w):
    # TODO(synk): bucket input sizes in production to limit per-shape recompiles.
    tile_h = _pick_tile_h(pad_h)
    grid = (pad_h // tile_h,)
    kernel = partial(_norm_resize_tile_kernel, chans=chans, tile_h=tile_h,
                     out_h=out_h, out_w=out_w)
    call = pl.pallas_call(
        kernel,
        out_shape=jax.ShapeDtypeStruct((batch, max_c, pad_h, pad_w), jnp.float32),
        grid=grid,
        in_specs=[
            pl.BlockSpec(memory_space=pltpu.MemorySpace.SMEM),            # scale (C,)
            pl.BlockSpec(memory_space=pltpu.MemorySpace.SMEM),            # bias  (C,)
            # TODO(synk): at production sizes (800x1333) fetch only the 2-tap
            # input row band per tile instead of keeping the full image resident.
            pl.BlockSpec((chans, in_h, in_w), lambda i: (0, 0, 0)),       # image, resident
            pl.BlockSpec((tile_h, in_h), lambda i: (i, 0)),               # Wy row tile
            pl.BlockSpec((in_w, pad_w), lambda i: (0, 0)),                # Wx^T, resident
            pl.BlockSpec(memory_space=pl.ANY),                            # batched buffer (aliased)
        ],
        # Each image writes its own batch slot; other slots / channels keep the
        # zero-initialized contents of the aliased buffer.
        out_specs=pl.BlockSpec((1, chans, tile_h, pad_w), lambda i: (slot, 0, i, 0)),
        input_output_aliases={5: 0},
        compiler_params=pltpu.CompilerParams(
            dimension_semantics=("parallel",),
            vmem_limit_bytes=_vmem_limit_bytes(chans, in_h, in_w, tile_h, pad_w)),
    )
    # Donate the batched buffer so the in-place alias is copy-free.
    return jax.jit(call, donate_argnums=(5,))


def normalize_resize_into_batch(batched, image, scale, bias, slot, out_h, out_w):
    """Normalize + bilinear-resize one (C, H, W) image and write it (zero-padded)
    into `batched[slot]` of the (B, C, padH, padW) buffer, in place."""
    batch, max_c, pad_h, pad_w = batched.shape
    chans, in_h, in_w = image.shape
    wy, wxt = _interp_matrices(in_h, in_w, out_h, out_w, pad_h, pad_w)
    call = _build_norm_resize_into_slot(batch, max_c, slot, chans, in_h, in_w,
                                        out_h, out_w, pad_h, pad_w)
    return call(scale, bias, image, wy, wxt, batched)


# ---------------------------------------------------------------------------
# GeneralTrans.forward equivalent (eval mode: size = min_size[-1])
# ---------------------------------------------------------------------------
def general_trans_forward(images, targets=None):
    min_size = TRANS_CFG["min_size"]
    if not isinstance(min_size, (list, tuple)):
        min_size = (min_size,)
    max_size = TRANS_CFG["max_size"]

    mean = np.asarray(TRANS_CFG["img_mean"], dtype=np.float32)
    std = np.asarray(TRANS_CFG["img_std"], dtype=np.float32)
    inv_std = 1.0 / std
    scale = jnp.asarray(inv_std)                # out = resized * scale + bias
    bias = jnp.asarray(-mean * inv_std)

    # Per-image output sizes (eval mode: size = min_size[-1]).
    out_sizes = []
    for image in images:
        if image.ndim != 3:
            raise ValueError(
                "images is expected to be a list of 3d tensors of shape "
                f"[C, H, W], got {image.shape}")
        _, h, w = image.shape
        min_s, max_s = float(min(h, w)), float(max(h, w))
        sf = float(min_size[-1]) / min_s
        if max_s * sf > max_size:
            sf = max_size / max_s
        out_sizes.append((int(math.floor(h * sf)), int(math.floor(w * sf))))

    # batch_images: shared padded shape, H/W rounded up to a multiple of 32.
    # TODO(synk): rounding padW up to 128 would make the stores lane-dense, but
    # it would change the module's pad-to-32 output shape, so we keep 32.
    stride = 32
    max_c = max(img.shape[0] for img in images)
    pad_h = int(math.ceil(max(oh for oh, _ in out_sizes) / stride) * stride)
    pad_w = int(math.ceil(max(ow for _, ow in out_sizes) / stride) * stride)

    batched = jnp.zeros((len(images), max_c, pad_h, pad_w), jnp.float32)
    for b, (image, (oh, ow)) in enumerate(zip(images, out_sizes)):
        batched = normalize_resize_into_batch(batched, image, scale, bias, b, oh, ow)

    image_list = ImageList(batched, out_sizes)
    # TODO(synk): target (boxes/masks/keypoints) resizing, postprocess and
    # paste_masks_in_image are per-image Python dict/list glue, not the tensor
    # hot path; they are not translated here.
    return image_list, targets


# ---------------------------------------------------------------------------
# Reference (pure JAX, f32) for a correctness sanity check
# ---------------------------------------------------------------------------
def _reference_norm_resize(image, mean, std, out_h, out_w):
    xn = (image - mean[:, None, None]) / std[:, None, None]
    wy = jnp.asarray(_bilinear_matrix_np(out_h, image.shape[1]))
    wx = jnp.asarray(_bilinear_matrix_np(out_w, image.shape[2]))
    return jnp.einsum("oh,chw,pw->cop", wy, xn, wx)


if __name__ == "__main__":
    key = jax.random.PRNGKey(0)
    k1, k2 = jax.random.split(key)
    # Two CHW images of different spatial sizes (list input, like the module).
    img0 = jax.random.uniform(k1, (3, 16, 16), dtype=jnp.float32)
    img1 = jax.random.uniform(k2, (3, 16, 24), dtype=jnp.float32)
    images = [img0, img1]

    image_list, targets = general_trans_forward(images, targets=None)
    batched = jax.block_until_ready(image_list.tensors)
    image_sizes = image_list.image_sizes

    mean = jnp.asarray(TRANS_CFG["img_mean"], dtype=jnp.float32)
    std = jnp.asarray(TRANS_CFG["img_std"], dtype=jnp.float32)

    assert batched.shape == (2, 3, 32, 64), batched.shape
    assert tuple(image_sizes[0]) == (32, 32) and tuple(image_sizes[1]) == (32, 48)
    assert targets is None

    ok = True
    for i, (img, (oh, ow)) in enumerate(zip(images, image_sizes)):
        ref = _reference_norm_resize(img, mean, std, int(oh), int(ow))
        got = batched[i, :, :oh, :ow]
        # f32 MXU operands now -> much tighter than the previous bf16 path.
        ok &= bool(jnp.allclose(got, ref, atol=3e-2, rtol=3e-2))
        # pad region must be exactly zero (batch_images semantics)
        ok &= bool(jnp.all(batched[i, :, oh:, :] == 0))
        ok &= bool(jnp.all(batched[i, :, :, ow:] == 0))
    assert ok
    print("KERNEL_OK")
</pallas_src>

<mosaic_0001>
module attributes {stable_mosaic.version = 11 : i64} {
  func.func @_norm_resize_tile_kernel(%arg0: i32, %arg1: memref<3xf32, #tpu.memory_space<smem>>, %arg2: memref<3xf32, #tpu.memory_space<smem>>, %arg3: memref<3x16x16xf32, #tpu.memory_space<vmem>>, %arg4: memref<32x16xf32, #tpu.memory_space<vmem>>, %arg5: memref<16x64xf32, #tpu.memory_space<vmem>>, %arg6: memref<2x3x32x64xf32, #tpu.memory_space<any>>, %arg7: memref<1x3x32x64xf32, #tpu.memory_space<vmem>>) attributes {dimension_semantics = [#tpu.dimension_semantics<parallel>], iteration_bounds = array<i64: 1>, scalar_prefetch = 0 : i64, scratch_operands = 0 : i64, tpu.core_type = #tpu.core_type<tc>, window_params = [{transform_indices = @transform_0, window_bounds = array<i64: 3>}, {transform_indices = @transform_1, window_bounds = array<i64: 3>}, {pipeline_mode = #tpu.pipeline_mode<synchronous>, transform_indices = @transform_2, window_bounds = array<i64: 3, 16, 16>}, {transform_indices = @transform_3, window_bounds = array<i64: 32, 16>}, {pipeline_mode = #tpu.pipeline_mode<synchronous>, transform_indices = @transform_4, window_bounds = array<i64: 16, 64>}, {}, {transform_indices = @transform_6, window_bounds = array<i64: 1, 3, 32, 64>}]} {
    %c32_i32 = arith.constant 32 : i32
    %0 = arith.muli %arg0, %c32_i32 : i32
    %1 = tpu.iota {dimensions = array<i32: 0>} : vector<32x64xi32>
    %2 = vector.broadcast %0 : i32 to vector<32x64xi32>
    %3 = arith.addi %1, %2 : vector<32x64xi32>
    %4 = tpu.iota {dimensions = array<i32: 1>} : vector<32x64xi32>
    %c32_i32_0 = arith.constant 32 : i32
    %5 = vector.broadcast %c32_i32_0 : i32 to vector<32x64xi32>
    %6 = arith.cmpi slt, %3, %5 : vector<32x64xi32>
    %c32_i32_1 = arith.constant 32 : i32
    %7 = vector.broadcast %c32_i32_1 : i32 to vector<32x64xi32>
    %8 = arith.cmpi slt, %4, %7 : vector<32x64xi32>
    %9 = arith.andi %6, %8 : vector<32x64xi1>
    %10 = arith.extui %9 : vector<32x64xi1> to vector<32x64xi32>
    %11 = arith.sitofp %10 : vector<32x64xi32> to vector<32x64xf32>
    %c0 = arith.constant 0 : index
    %c0_2 = arith.constant 0 : index
    %12 = vector.load %arg4[%c0, %c0_2] : memref<32x16xf32, #tpu.memory_space<vmem>>, vector<32x16xf32>
    %c0_3 = arith.constant 0 : index
    %c0_4 = arith.constant 0 : index
    %13 = vector.load %arg5[%c0_3, %c0_4] : memref<16x64xf32, #tpu.memory_space<vmem>>, vector<16x64xf32>
    %c0_5 = arith.constant 0 : index
    %c0_6 = arith.constant 0 : index
    %c0_7 = arith.constant 0 : index
    %14 = vector.load %arg3[%c0_5, %c0_6, %c0_7] : memref<3x16x16xf32, #tpu.memory_space<vmem>>, vector<1x16x16xf32>
    %15 = vector.shape_cast %14 : vector<1x16x16xf32> to vector<16x16xf32>
    %cst = arith.constant dense<0.000000e+00> : vector<32x16xf32>
    %16 = tpu.matmul %12, %15, %cst {dimension_numbers = #tpu.dot_dimension_numbers<[1], [0], [0], [1], [0, 0, 1, 1], [], []>} : vector<32x16xf32>, vector<16x16xf32>, vector<32x16xf32> -> vector<32x16xf32>
    %cst_8 = arith.constant dense<0.000000e+00> : vector<32x64xf32>
    %17 = tpu.matmul %16, %13, %cst_8 {dimension_numbers = #tpu.dot_dimension_numbers<[1], [0], [0], [1], [0, 0, 1, 1], [], []>} : vector<32x16xf32>, vector<16x64xf32>, vector<32x64xf32> -> vector<32x64xf32>
    %c0_9 = arith.constant 0 : index
    %18 = memref.load %arg1[%c0_9] : memref<3xf32, #tpu.memory_space<smem>>
    %19 = vector.broadcast %18 : f32 to vector<32x64xf32>
    %20 = arith.mulf %17, %19 : vector<32x64xf32>
    %c0_10 = arith.constant 0 : index
    %21 = memref.load %arg2[%c0_10] : memref<3xf32, #tpu.memory_space<smem>>
    %22 = vector.broadcast %21 : f32 to vector<32x64xf32>
    %23 = arith.mulf %22, %11 : vector<32x64xf32>
    %24 = arith.addf %20, %23 : vector<32x64xf32>
    %c0_11 = arith.constant 0 : index
    %c0_12 = arith.constant 0 : index
    %c0_13 = arith.constant 0 : index
    %c0_14 = arith.constant 0 : index
    %25 = vector.load %arg7[%c0_11, %c0_12, %c0_13, %c0_14] : memref<1x3x32x64xf32, #tpu.memory_space<vmem>>, vector<1x1x32x64xf32>
    %26 = vector.shape_cast %25 : vector<1x1x32x64xf32> to vector<32x64xf32>
    %27 = vector.shape_cast %24 : vector<32x64xf32> to vector<1x1x32x64xf32>
    tpu.vector_store %arg7[%c0_11, %c0_12, %c0_13, %c0_14], %27 {strides = array<i32>} : memref<1x3x32x64xf32, #tpu.memory_space<vmem>>, vector<1x1x32x64xf32>,
    %c1 = arith.constant 1 : index
    %c0_15 = arith.constant 0 : index
    %c0_16 = arith.constant 0 : index
    %28 = vector.load %arg3[%c1, %c0_15, %c0_16] : memref<3x16x16xf32, #tpu.memory_space<vmem>>, vector<1x16x16xf32>
    %29 = vector.shape_cast %28 : vector<1x16x16xf32> to vector<16x16xf32>
    %cst_17 = arith.constant dense<0.000000e+00> : vector<32x16xf32>
    %30 = tpu.matmul %12, %29, %cst_17 {dimension_numbers = #tpu.dot_dimension_numbers<[1], [0], [0], [1], [0, 0, 1, 1], [], []>} : vector<32x16xf32>, vector<16x16xf32>, vector<32x16xf32> -> vector<32x16xf32>
    %cst_18 = arith.constant dense<0.000000e+00> : vector<32x64xf32>
    %31 = tpu.matmul %30, %13, %cst_18 {dimension_numbers = #tpu.dot_dimension_numbers<[1], [0], [0], [1], [0, 0, 1, 1], [], []>} : vector<32x16xf32>, vector<16x64xf32>, vector<32x64xf32> -> vector<32x64xf32>
    %c1_19 = arith.constant 1 : index
    %32 = memref.load %arg1[%c1_19] : memref<3xf32, #tpu.memory_space<smem>>
    %33 = vector.broadcast %32 : f32 to vector<32x64xf32>
    %34 = arith.mulf %31, %33 : vector<32x64xf32>
    %c1_20 = arith.constant 1 : index
    %35 = memref.load %arg2[%c1_20] : memref<3xf32, #tpu.memory_space<smem>>
    %36 = vector.broadcast %35 : f32 to vector<32x64xf32>
    %37 = arith.mulf %36, %11 : vector<32x64xf32>
    %38 = arith.addf %34, %37 : vector<32x64xf32>
    %c0_21 = arith.constant 0 : index
    %c1_22 = arith.constant 1 : index
    %c0_23 = arith.constant 0 : index
    %c0_24 = arith.constant 0 : index
    %39 = vector.load %arg7[%c0_21, %c1_22, %c0_23, %c0_24] : memref<1x3x32x64xf32, #tpu.memory_space<vmem>>, vector<1x1x32x64xf32>
    %40 = vector.shape_cast %39 : vector<1x1x32x64xf32> to vector<32x64xf32>
    %41 = vector.shape_cast %38 : vector<32x64xf32> to vector<1x1x32x64xf32>
    tpu.vector_store %arg7[%c0_21, %c1_22, %c0_23, %c0_24], %41 {strides = array<i32>} : memref<1x3x32x64xf32, #tpu.memory_space<vmem>>, vector<1x1x32x64xf32>,
    %c2 = arith.constant 2 : index
    %c0_25 = arith.constant 0 : index
    %c0_26 = arith.constant 0 : index
    %42 = vector.load %arg3[%c2, %c0_25, %c0_26] : memref<3x16x16xf32, #tpu.memory_space<vmem>>, vector<1x16x16xf32>
    %43 = vector.shape_cast %42 : vector<1x16x16xf32> to vector<16x16xf32>
    %cst_27 = arith.constant dense<0.000000e+00> : vector<32x16xf32>
    %44 = tpu.matmul %12, %43, %cst_27 {dimension_numbers = #tpu.dot_dimension_numbers<[1], [0], [0], [1], [0, 0, 1, 1], [], []>} : vector<32x16xf32>, vector<16x16xf32>, vector<32x16xf32> -> vector<32x16xf32>
    %cst_28 = arith.constant dense<0.000000e+00> : vector<32x64xf32>
    %45 = tpu.matmul %44, %13, %cst_28 {dimension_numbers = #tpu.dot_dimension_numbers<[1], [0], [0], [1], [0, 0, 1, 1], [], []>} : vector<32x16xf32>, vector<16x64xf32>, vector<32x64xf32> -> vector<32x64xf32>
    %c2_29 = arith.constant 2 : index
    %46 = memref.load %arg1[%c2_29] : memref<3xf32, #tpu.memory_space<smem>>
    %47 = vector.broadcast %46 : f32 to vector<32x64xf32>
    %48 = arith.mulf %45, %47 : vector<32x64xf32>
    %c2_30 = arith.constant 2 : index
    %49 = memref.load %arg2[%c2_30] : memref<3xf32, #tpu.memory_space<smem>>
    %50 = vector.broadcast %49 : f32 to vector<32x64xf32>
    %51 = arith.mulf %50, %11 : vector<32x64xf32>
    %52 = arith.addf %48, %51 : vector<32x64xf32>
    %c0_31 = arith.constant 0 : index
    %c2_32 = arith.constant 2 : index
    %c0_33 = arith.constant 0 : index
    %c0_34 = arith.constant 0 : index
    %53 = vector.load %arg7[%c0_31, %c2_32, %c0_33, %c0_34] : memref<1x3x32x64xf32, #tpu.memory_space<vmem>>, vector<1x1x32x64xf32>
    %54 = vector.shape_cast %53 : vector<1x1x32x64xf32> to vector<32x64xf32>
    %55 = vector.shape_cast %52 : vector<32x64xf32> to vector<1x1x32x64xf32>
    tpu.vector_store %arg7[%c0_31, %c2_32, %c0_33, %c0_34], %55 {strides = array<i32>} : memref<1x3x32x64xf32, #tpu.memory_space<vmem>>, vector<1x1x32x64xf32>,
    return
  }
  func.func @transform_0(%arg0: i32) -> i32 {
    %c0_i32 = arith.constant 0 : i32
    %c0_i32_0 = arith.constant 0 : i32
    return %c0_i32 : i32
  }
  func.func @transform_1(%arg0: i32) -> i32 {
    %c0_i32 = arith.constant 0 : i32
    %c0_i32_0 = arith.constant 0 : i32
    return %c0_i32 : i32
  }
  func.func @transform_2(%arg0: i32) -> (i32, i32, i32) {
    %c0_i32 = arith.constant 0 : i32
    %c0_i32_0 = arith.constant 0 : i32
    %c0_i32_1 = arith.constant 0 : i32
    %c0_i32_2 = arith.constant 0 : i32
    return %c0_i32, %c0_i32_0, %c0_i32_1 : i32, i32, i32
  }
  func.func @transform_3(%arg0: i32) -> (i32, i32) {
    %c0_i32 = arith.constant 0 : i32
    %c0_i32_0 = arith.constant 0 : i32
    return %arg0, %c0_i32 : i32, i32
  }
  func.func @transform_4(%arg0: i32) -> (i32, i32) {
    %c0_i32 = arith.constant 0 : i32
    %c0_i32_0 = arith.constant 0 : i32
    %c0_i32_1 = arith.constant 0 : i32
    return %c0_i32, %c0_i32_0 : i32, i32
  }
  func.func @transform_6(%arg0: i32) -> (i32, i32, i32, i32) {
    %c0_i32 = arith.constant 0 : i32
    %c0_i32_0 = arith.constant 0 : i32
    %c0_i32_1 = arith.constant 0 : i32
    %c0_i32_2 = arith.constant 0 : i32
    return %c0_i32, %c0_i32_0, %arg0, %c0_i32_1 : i32, i32, i32, i32
  }
}

</mosaic_0001>

<llo_original>
// kernel: tpu_custom_call.1
$region0: #{tpu_custom_call.1}
  #allocation0 [shape = 'u32[]', space=smem, size = 0x4, offset = 0x4, fixed_abs, tag = 'smem constant byte address 0x4 - core index']
  #allocation1 [shape = 'u32[144,128]{1,0:T(1,128)}', space=vmem, size = 0x12000, scoped, tag = 'internal scratch']
  %s0 = inlined_call_operand.vmem [shape: f32[3], index: 0, kind: input, shape index: {}]
  %s1 = inlined_call_operand.vmem [shape: f32[3], index: 1, kind: input, shape index: {}]
  %s2 = inlined_call_operand.vmem [shape: f32[3,16,16], index: 2, kind: input, shape index: {}]
  %s3 = inlined_call_operand.vmem [shape: f32[32,16], index: 3, kind: input, shape index: {}]
  %s4 = inlined_call_operand.hbm [shape: f32[16,64], index: 4, kind: input, shape index: {}]
  %s5 = inlined_call_operand.hbm [shape: f32[2,3,32,64], index: 5, kind: input, shape index: {}, may-alias: {5,6}]
  %s6 = inlined_call_operand.hbm [shape: f32[2,3,32,64], index: 6, kind: output, shape index: {}, may-alias: {5,6}]
  %s7 = sld [smem:[#allocation0]]
  $region42: #{tpu_custom_call.1} parent=0
    _
  %s9 = ssub.s32 1, %s7
  %s10 = scalar_select 0, %s9, %s7
  $region1: #{tpu_custom_call.1} parent=0
    #allocation2 [shape = 'u8[512]{0}', space=smem, size = 0x200, scoped, tag = 'input window, operand 0, single buffered']
    #allocation3 [shape = 's32[1]{0}', space=sflag, size = 0x4, scoped, tag = 'scoped memory for tpu_custom_call.1']
    #allocation4 [shape = 's32[1]{0}', space=sflag, size = 0x4, scoped, tag = 'scoped memory for tpu_custom_call.1']
    #allocation5 [shape = 's32[1]{0}', space=sflag, size = 0x4, scoped, tag = 'scoped memory for tpu_custom_call.1']
    #allocation6 [shape = 'u8[512]{0}', space=smem, size = 0x200, scoped, tag = 'input window, operand 1, single buffered']
    #allocation7 [shape = 's32[1]{0}', space=sflag, size = 0x4, scoped, tag = 'scoped memory for tpu_custom_call.1']
    #allocation8 [shape = 'u8[8192]{0}', space=vmem, size = 0x2000, scoped, tag = 'input window, operand 4, single buffered']
    #allocation9 [shape = 'u8[49152]{0}', space=vmem, size = 0xc000, scoped, tag = 'output window, operand 0, single buffered']
    %11 = vsyncpa [#allocation5], 0
    %12 = vsyncpa [#allocation7], 0
    %13 = vsyncpa [#allocation3], 0
    %14 = vsyncpa [#allocation4], 0
    // Predicated region
    $region2: #{tpu_custom_call.1} parent=1 // pred_check
      _
    $region3: #{tpu_custom_call.1} parent=1 // pred_check_branch
      %16 = sbr.rel (0) target = $region5
    $region4: #{tpu_custom_call.1} parent=1 // pred_region
      %s18 = ssub.s32 16, 16
      %19 = vsyncadd [#allocation5], %s18
      %s21 = sshll.u32 %s0, 4
      %s22 = int_to_ptr.vmem [resolvable:$true] %s21
      %24 = dma.vmem_to_smem %s22, 16, [#allocation2], [#allocation5]
    $region5: #{tpu_custom_call.1} parent=1 // pred_fallthru
      _
    // Predicated region
    $region6: #{tpu_custom_call.1} parent=1 // pred_check
      _
    $region7: #{tpu_custom_call.1} parent=1 // pred_check_branch
      %26 = sbr.rel (0) target = $region9
    $region8: #{tpu_custom_call.1} parent=1 // pred_region
      %s28 = ssub.s32 16, 16
      %29 = vsyncadd [#allocation7], %s28
      %s31 = sshll.u32 %s1, 4
      %s32 = int_to_ptr.vmem [resolvable:$true] %s31
      %34 = dma.vmem_to_smem %s32, 16, [#allocation6], [#allocation7]
    $region9: #{tpu_custom_call.1} parent=1 // pred_fallthru
      _
    // Predicated region
    $region10: #{tpu_custom_call.1} parent=1 // pred_check
      _
    $region11: #{tpu_custom_call.1} parent=1 // pred_check_branch
      %36 = sbr.rel (0) target = $region13
    $region12: #{tpu_custom_call.1} parent=1 // pred_region
      _
    $region13: #{tpu_custom_call.1} parent=1 // pred_fallthru
      _
    // Predicated region
    $region14: #{tpu_custom_call.1} parent=1 // pred_check
      _
    $region15: #{tpu_custom_call.1} parent=1 // pred_check_branch
      %38 = sbr.rel (0) target = $region17
    $region16: #{tpu_custom_call.1} parent=1 // pred_region
      _
    $region17: #{tpu_custom_call.1} parent=1 // pred_fallthru
      _
    // Predicated region
    $region18: #{tpu_custom_call.1} parent=1 // pred_check
      _
    $region19: #{tpu_custom_call.1} parent=1 // pred_check_branch
      %40 = sbr.rel (0) target = $region21
    $region20: #{tpu_custom_call.1} parent=1 // pred_region
      %s42 = ssub.s32 256, 256
      %43 = vsyncadd [#allocation3], %s42
      %s44 = sshll.u32 [#allocation8], 4
      %s45 = int_to_ptr.vmem [resolvable:$true] %s44
      %50 = dma.hbm_to_vmem [thread:$0]  %s4, 256, %s45, [#allocation3], 128, 128, 8
    $region21: #{tpu_custom_call.1} parent=1 // pred_fallthru
      _
    // Predicated region
    $region22: #{tpu_custom_call.1} parent=1 // pred_check
      _
    $region23: #{tpu_custom_call.1} parent=1 // pred_check_branch
      %52 = sbr.rel (0) target = $region25
    $region24: #{tpu_custom_call.1} parent=1 // pred_region
      %53 = dma.done [#allocation5], 16
    $region25: #{tpu_custom_call.1} parent=1 // pred_fallthru
      _
    // Predicated region
    $region26: #{tpu_custom_call.1} parent=1 // pred_check
      _
    $region27: #{tpu_custom_call.1} parent=1 // pred_check_branch
      %55 = sbr.rel (0) target = $region29
    $region28: #{tpu_custom_call.1} parent=1 // pred_region
      %56 = dma.done [#allocation7], 16
    $region29: #{tpu_custom_call.1} parent=1 // pred_fallthru
      _
    // Predicated region
    $region30: #{tpu_custom_call.1} parent=1 // pred_check
      _
    $region31: #{tpu_custom_call.1} parent=1 // pred_check_branch
      %58 = sbr.rel (0) target = $region33
    $region32: #{tpu_custom_call.1} parent=1 // pred_region
      %59 = dma.done [#allocation3], 256
    $region33: #{tpu_custom_call.1} parent=1 // pred_fallthru
      _
    %60 = sfence
    %s61 = smul.u32 0, 32
    %v62 = vlaneseq
    %v63 = vshrl.u32 %v62, 7
    %v64 = vadd.s32 %v63, 8
    %v65 = vadd.s32 %v63, 16
    %v66 = vadd.s32 %v63, 24
    %v67 = vstv %s61
    %v68 = vadd.s32 %v63, %v67
    %v69 = vadd.s32 %v64, %v67
    %v70 = vadd.s32 %v65, %v67
    %v71 = vadd.s32 %v66, %v67
    %v72 = vlaneseq
    %v73 = vand.u32 %v72, 127
    %vm74 = vcmp.lt.s32.totalorder %v68, 32
    %vm75 = vcmp.lt.s32.totalorder %v69, 32
    %vm76 = vcmp.lt.s32.totalorder %v70, 32
    %vm77 = vcmp.lt.s32.totalorder %v71, 32
    %vm78 = vcmp.lt.s32.totalorder %v73, 32
    %vm79 = vmand %vm74, %vm78
    %vm80 = vmand %vm75, %vm78
    %vm81 = vmand %vm76, %vm78
    %vm82 = vmand %vm77, %vm78
    %v83 = vsel %vm79, 1, 0
    %v84 = vsel %vm80, 1, 0
    %v85 = vsel %vm81, 1, 0
    %v86 = vsel %vm82, 1, 0
    %v87 = vcvt.s32.f32 %v83
    %v88 = vcvt.s32.f32 %v84
    %v89 = vcvt.s32.f32 %v85
    %v90 = vcvt.s32.f32 %v86
    %v91 = vld [vmem:[%s3] sm:$0xff]
    %v92 = vld [vmem:[%s3 + $0x8] sm:$0xff]
    %v93 = vld [vmem:[%s3 + $0x10] sm:$0xff]
    %v94 = vld [vmem:[%s3 + $0x18] sm:$0xff]
    %v95 = vld [vmem:[#allocation8] sm:$0xff]
    %v96 = vld [vmem:[#allocation8 + $0x8] sm:$0xff]
    %v97 = vld [vmem:[%s2] sm:$0xff]
    %v98 = vld [vmem:[%s2 + $0x8] sm:$0xff]
    %vm99 = vcmask 130048
    %v101 = vsel %vm99, %v91, 0
    %v104 = vsel %vm99, %v92, 0
    %v107 = vsel %vm99, %v93, 0
    %v110 = vsel %vm99, %v94, 0
    %112 = vmatprep.subr.mxu0 0.0
    %113 = vmatpush1.msra.mxu0 %v97
    %114 = vmatprep.subr.mxu0 0.0
    %115 = vmatpush1.msra.mxu0 %v98
    %116 = vmatprep.subr.mxu0 0.0
    %117 = vmatpush1.msra.mxu0 0.0
    %118 = vmatprep.subr.mxu0 0.0
    %119 = vmatpush1.msra.mxu0 0.0
    %120 = vmatprep.subr.mxu0 0.0
    %121 = vmatpush1.msra.mxu0 0.0
    %122 = vmatprep.subr.mxu0 0.0
    %123 = vmatpush1.msra.mxu0 0.0
    %124 = vmatprep.subr.mxu0 0.0
    %125 = vmatpush1.msra.mxu0 0.0
    %126 = vmatprep.subr.mxu0 0.0
    %127 = vmatpush1.msra.mxu0 0.0
    %128 = vmatprep.subr.mxu0 0.0
    %129 = vmatpush1.msra.mxu0 0.0
    %130 = vmatprep.subr.mxu0 0.0
    %131 = vmatpush1.msra.mxu0 0.0
    %132 = vmatprep.subr.mxu0 0.0
    %133 = vmatpush1.msra.mxu0 0.0
    %134 = vmatprep.subr.mxu0 0.0
    %135 = vmatpush1.msra.mxu0 0.0
    %136 = vmatprep.subr.mxu0 0.0
    %137 = vmatpush1.msra.mxu0 0.0
    %138 = vmatprep.subr.mxu0 0.0
    %139 = vmatpush1.msra.mxu0 0.0
    %140 = vmatprep.subr.mxu0 0.0
    %141 = vmatpush1.msra.mxu0 0.0
    %142 = vmatprep.subr.mxu0 0.0
    %143 = vmatpush1.msra.mxu0 0.0
    %144 = vmatprep.subr.mxu0 0.0
    %145 = vmatpush1.msra.mxu0 0.0
    %146 = vmatprep.subr.mxu0 0.0
    %147 = vmatpush1.msra.mxu0 0.0
    %148 = vmatprep.subr.mxu0 0.0
    %149 = vmatpush1.msra.mxu0 0.0
    %150 = vmatprep.subr.mxu0 0.0
    %151 = vmatpush1.msra.mxu0 0.0
    %152 = vmatprep.subr.mxu0 0.0
    %153 = vmatpush1.msra.mxu0 0.0
    %154 = vmatprep.subr.mxu0 0.0
    %155 = vmatpush1.msra.mxu0 0.0
    %156 = vmatprep.subr.mxu0 0.0
    %157 = vmatpush1.msra.mxu0 0.0
    %158 = vmatprep.subr.mxu0 0.0
    %159 = vmatpush1.msra.mxu0 0.0
    %160 = vmatprep.subr.mxu0 0.0
    %161 = vmatpush1.msra.mxu0 0.0
    %162 = vmatprep.subr.mxu0 0.0
    %163 = vmatpush1.msra.mxu0 0.0
    %164 = vmatprep.subr.mxu0 0.0
    %165 = vmatpush1.msra.mxu0 0.0
    %166 = vmatprep.subr.mxu0 0.0
    %167 = vmatpush1.msra.mxu0 0.0
    %168 = vmatprep.subr.mxu0 0.0
    %169 = vmatpush1.msra.mxu0 0.0
    %170 = vmatprep.subr.mxu0 0.0
    %171 = vmatpush1.msra.mxu0 0.0
    %172 = vmatprep.subr.mxu0 0.0
    %173 = vmatpush1.msra.mxu0 0.0
    %174 = vmatprep.subr.mxu0 0.0
    %175 = vmatpush1.msra.mxu0 0.0
    %176 = vmatprep.mubr.f32.mxu0 0.0
    %177 = vmatmul.mubr.f32.gmra.mrb[0].mxu0 %v101
    %v178 = vpop.f32.mrb[0].mxu0
    %v179 = vadd.f32 0.0, %v178
    %v180 = vpop.f32.mrb[0].mxu0
    %181 = vmatprep.mubr.f32.mxu0 0.0
    %182 = vmatmul.mubr.f32.gmra.mrb[0].mxu0 %v104
    %v183 = vpop.f32.mrb[0].mxu0
    %v184 = vadd.f32 0.0, %v183
    %v185 = vpop.f32.mrb[0].mxu0
    %186 = vmatprep.mubr.f32.mxu0 0.0
    %187 = vmatmul.mubr.f32.gmra.mrb[0].mxu0 %v107
    %v188 = vpop.f32.mrb[0].mxu0
    %v189 = vadd.f32 0.0, %v188
    %v190 = vpop.f32.mrb[0].mxu0
    %191 = vmatprep.mubr.f32.mxu0 0.0
    %192 = vmatmul.mubr.f32.gmra.mrb[0].mxu0 %v110
    %v193 = vpop.f32.mrb[0].mxu0
    %v194 = vadd.f32 0.0, %v193
    %v195 = vpop.f32.mrb[0].mxu0
    %196 = vdwg.mxu0
    %v198 = vsel %vm99, %v179, 0
    %v201 = vsel %vm99, %v184, 0
    %v204 = vsel %vm99, %v189, 0
    %v207 = vsel %vm99, %v194, 0
    %209 = vmatprep.subr.mxu0 0.0
    %210 = vmatpush1.msra.mxu0 %v95
    %211 = vmatprep.subr.mxu0 0.0
    %212 = vmatpush1.msra.mxu0 %v96
    %213 = vmatprep.subr.mxu0 0.0
    %214 = vmatpush1.msra.mxu0 0.0
    %215 = vmatprep.subr.mxu0 0.0
    %216 = vmatpush1.msra.mxu0 0.0
    %217 = vmatprep.subr.mxu0 0.0
    %218 = vmatpush1.msra.mxu0 0.0
    %219 = vmatprep.subr.mxu0 0.0
    %220 = vmatpush1.msra.mxu0 0.0
    %221 = vmatprep.subr.mxu0 0.0
    %222 = vmatpush1.msra.mxu0 0.0
    %223 = vmatprep.subr.mxu0 0.0
    %224 = vmatpush1.msra.mxu0 0.0
    %225 = vmatprep.subr.mxu0 0.0
    %226 = vmatpush1.msra.mxu0 0.0
    %227 = vmatprep.subr.mxu0 0.0
    %228 = vmatpush1.msra.mxu0 0.0
    %229 = vmatprep.subr.mxu0 0.0
    %230 = vmatpush1.msra.mxu0 0.0
    %231 = vmatprep.subr.mxu0 0.0
    %232 = vmatpush1.msra.mxu0 0.0
    %233 = vmatprep.subr.mxu0 0.0
    %234 = vmatpush1.msra.mxu0 0.0
    %235 = vmatprep.subr.mxu0 0.0
    %236 = vmatpush1.msra.mxu0 0.0
    %237 = vmatprep.subr.mxu0 0.0
    %238 = vmatpush1.msra.mxu0 0.0
    %239 = vmatprep.subr.mxu0 0.0
    %240 = vmatpush1.msra.mxu0 0.0
    %241 = vmatprep.subr.mxu0 0.0
    %242 = vmatpush1.msra.mxu0 0.0
    %243 = vmatprep.subr.mxu0 0.0
    %244 = vmatpush1.msra.mxu0 0.0
    %245 = vmatprep.subr.mxu0 0.0
    %246 = vmatpush1.msra.mxu0 0.0
    %247 = vmatprep.subr.mxu0 0.0
    %248 = vmatpush1.msra.mxu0 0.0
    %249 = vmatprep.subr.mxu0 0.0
    %250 = vmatpush1.msra.mxu0 0.0
    %251 = vmatprep.subr.mxu0 0.0
    %252 = vmatpush1.msra.mxu0 0.0
    %253 = vmatprep.subr.mxu0 0.0
    %254 = vmatpush1.msra.mxu0 0.0
    %255 = vmatprep.subr.mxu0 0.0
    %256 = vmatpush1.msra.mxu0 0.0
    %257 = vmatprep.subr.mxu0 0.0
    %258 = vmatpush1.msra.mxu0 0.0
    %259 = vmatprep.subr.mxu0 0.0
    %260 = vmatpush1.msra.mxu0 0.0
    %261 = vmatprep.subr.mxu0 0.0
    %262 = vmatpush1.msra.mxu0 0.0
    %263 = vmatprep.subr.mxu0 0.0
    %264 = vmatpush1.msra.mxu0 0.0
    %265 = vmatprep.subr.mxu0 0.0
    %266 = vmatpush1.msra.mxu0 0.0
    %267 = vmatprep.subr.mxu0 0.0
    %268 = vmatpush1.msra.mxu0 0.0
    %269 = vmatprep.subr.mxu0 0.0
    %270 = vmatpush1.msra.mxu0 0.0
    %271 = vmatprep.subr.mxu0 0.0
    %272 = vmatpush1.msra.mxu0 0.0
    %273 = vmatprep.mubr.f32.mxu0 0.0
    %274 = vmatmul.mubr.f32.gmra.mrb[0].mxu0 %v198
    %v275 = vpop.f32.mrb[0].mxu0
    %v276 = vadd.f32 0.0, %v275
    %v277 = vpop.f32.mrb[0].mxu0
    %278 = vmatprep.mubr.f32.mxu0 0.0
    %279 = vmatmul.mubr.f32.gmra.mrb[0].mxu0 %v201
    %v280 = vpop.f32.mrb[0].mxu0
    %v281 = vadd.f32 0.0, %v280
    %v282 = vpop.f32.mrb[0].mxu0
    %283 = vmatprep.mubr.f32.mxu0 0.0
    %284 = vmatmul.mubr.f32.gmra.mrb[0].mxu0 %v204
    %v285 = vpop.f32.mrb[0].mxu0
    %v286 = vadd.f32 0.0, %v285
    %v287 = vpop.f32.mrb[0].mxu0
    %288 = vmatprep.mubr.f32.mxu0 0.0
    %289 = vmatmul.mubr.f32.gmra.mrb[0].mxu0 %v207
    %v290 = vpop.f32.mrb[0].mxu0
    %v291 = vadd.f32 0.0, %v290
    %v292 = vpop.f32.mrb[0].mxu0
    %293 = vdwg.mxu0
    %s294 = sld [smem:[#allocation2]]
    %v295 = vstv %s294
    %v296 = vmul.f32 %v276, %v295
    %v297 = vmul.f32 %v281, %v295
    %v298 = vmul.f32 %v286, %v295
    %v299 = vmul.f32 %v291, %v295
    %s300 = sld [smem:[#allocation6]]
    %v301 = vstv %s300
    %v302 = vmul.f32 %v301, %v87
    %v303 = vmul.f32 %v301, %v88
    %v304 = vmul.f32 %v301, %v89
    %v305 = vmul.f32 %v301, %v90
    %v306 = vadd.f32 %v296, %v302
    %v307 = vadd.f32 %v297, %v303
    %v308 = vadd.f32 %v298, %v304
    %v309 = vadd.f32 %v299, %v305
    %vm310 = vcmask 523264
    %311 = vst.msk [vmem:[#allocation9] sm:$0xff] %vm310, %v306
    %312 = vst.msk [vmem:[#allocation9 + $0x8] sm:$0xff] %vm310, %v307
    %313 = vst.msk [vmem:[#allocation9 + $0x10] sm:$0xff] %vm310, %v308
    %314 = vst.msk [vmem:[#allocation9 + $0x18] sm:$0xff] %vm310, %v309
    %s315 = scalar_lea.vmem %s2, 16
    %v316 = vld [vmem:[%s315] sm:$0xff]
    %v317 = vld [vmem:[%s315 + $0x8] sm:$0xff]
    %318 = vmatprep.subr.mxu0 0.0
    %319 = vmatpush1.msra.mxu0 %v316
    %320 = vmatprep.subr.mxu0 0.0
    %321 = vmatpush1.msra.mxu0 %v317
    %322 = vmatprep.subr.mxu0 0.0
    %323 = vmatpush1.msra.mxu0 0.0
    %324 = vmatprep.subr.mxu0 0.0
    %325 = vmatpush1.msra.mxu0 0.0
    %326 = vmatprep.subr.mxu0 0.0
    %327 = vmatpush1.msra.mxu0 0.0
    %328 = vmatprep.subr.mxu0 0.0
    %329 = vmatpush1.msra.mxu0 0.0
    %330 = vmatprep.subr.mxu0 0.0
    %331 = vmatpush1.msra.mxu0 0.0
    %332 = vmatprep.subr.mxu0 0.0
    %333 = vmatpush1.msra.mxu0 0.0
    %334 = vmatprep.subr.mxu0 0.0
    %335 = vmatpush1.msra.mxu0 0.0
    %336 = vmatprep.subr.mxu0 0.0
    %337 = vmatpush1.msra.mxu0 0.0
    %338 = vmatprep.subr.mxu0 0.0
    %339 = vmatpush1.msra.mxu0 0.0
    %340 = vmatprep.subr.mxu0 0.0
    %341 = vmatpush1.msra.mxu0 0.0
    %342 = vmatprep.subr.mxu0 0.0
    %343 = vmatpush1.msra.mxu0 0.0
    %344 = vmatprep.subr.mxu0 0.0
    %345 = vmatpush1.msra.mxu0 0.0
    %346 = vmatprep.subr.mxu0 0.0
    %347 = vmatpush1.msra.mxu0 0.0
    %348 = vmatprep.subr.mxu0 0.0
    %349 = vmatpush1.msra.mxu0 0.0
    %350 = vmatprep.subr.mxu0 0.0
    %351 = vmatpush1.msra.mxu0 0.0
    %352 = vmatprep.subr.mxu0 0.0
    %353 = vmatpush1.msra.mxu0 0.0
    %354 = vmatprep.subr.mxu0 0.0
    %355 = vmatpush1.msra.mxu0 0.0
    %356 = vmatprep.subr.mxu0 0.0
    %357 = vmatpush1.msra.mxu0 0.0
    %358 = vmatprep.subr.mxu0 0.0
    %359 = vmatpush1.msra.mxu0 0.0
    %360 = vmatprep.subr.mxu0 0.0
    %361 = vmatpush1.msra.mxu0 0.0
    %362 = vmatprep.subr.mxu0 0.0
    %363 = vmatpush1.msra.mxu0 0.0
    %364 = vmatprep.subr.mxu0 0.0
    %365 = vmatpush1.msra.mxu0 0.0
    %366 = vmatprep.subr.mxu0 0.0
    %367 = vmatpush1.msra.mxu0 0.0
    %368 = vmatprep.subr.mxu0 0.0
    %369 = vmatpush1.msra.mxu0 0.0
    %370 = vmatprep.subr.mxu0 0.0
    %371 = vmatpush1.msra.mxu0 0.0
    %372 = vmatprep.subr.mxu0 0.0
    %373 = vmatpush1.msra.mxu0 0.0
    %374 = vmatprep.subr.mxu0 0.0
    %375 = vmatpush1.msra.mxu0 0.0
    %376 = vmatprep.subr.mxu0 0.0
    %377 = vmatpush1.msra.mxu0 0.0
    %378 = vmatprep.subr.mxu0 0.0
    %379 = vmatpush1.msra.mxu0 0.0
    %380 = vmatprep.subr.mxu0 0.0
    %381 = vmatpush1.msra.mxu0 0.0
    %382 = vmatprep.mubr.f32.mxu0 0.0
    %383 = vmatmul.mubr.f32.gmra.mrb[0].mxu0 %v101
    %v384 = vpop.f32.mrb[0].mxu0
    %v385 = vadd.f32 0.0, %v384
    %v386 = vpop.f32.mrb[0].mxu0
    %387 = vmatprep.mubr.f32.mxu0 0.0
    %388 = vmatmul.mubr.f32.gmra.mrb[0].mxu0 %v104
    %v389 = vpop.f32.mrb[0].mxu0
    %v390 = vadd.f32 0.0, %v389
    %v391 = vpop.f32.mrb[0].mxu0
    %392 = vmatprep.mubr.f32.mxu0 0.0
    %393 = vmatmul.mubr.f32.gmra.mrb[0].mxu0 %v107
    %v394 = vpop.f32.mrb[0].mxu0
    %v395 = vadd.f32 0.0, %v394
    %v396 = vpop.f32.mrb[0].mxu0
    %397 = vmatprep.mubr.f32.mxu0 0.0
    %398 = vmatmul.mubr.f32.gmra.mrb[0].mxu0 %v110
    %v399 = vpop.f32.mrb[0].mxu0
    %v400 = vadd.f32 0.0, %v399
    %v401 = vpop.f32.mrb[0].mxu0
    %402 = vdwg.mxu0
    %v404 = vsel %vm99, %v385, 0
    %v407 = vsel %vm99, %v390, 0
    %v410 = vsel %vm99, %v395, 0
    %v413 = vsel %vm99, %v400, 0
    %415 = vmatprep.subr.mxu0 0.0
    %416 = vmatpush1.msra.mxu0 %v95
    %417 = vmatprep.subr.mxu0 0.0
    %418 = vmatpush1.msra.mxu0 %v96
    %419 = vmatprep.subr.mxu0 0.0
    %420 = vmatpush1.msra.mxu0 0.0
    %421 = vmatprep.subr.mxu0 0.0
    %422 = vmatpush1.msra.mxu0 0.0
    %423 = vmatprep.subr.mxu0 0.0
    %424 = vmatpush1.msra.mxu0 0.0
    %425 = vmatprep.subr.mxu0 0.0
    %426 = vmatpush1.msra.mxu0 0.0
    %427 = vmatprep.subr.mxu0 0.0
    %428 = vmatpush1.msra.mxu0 0.0
    %429 = vmatprep.subr.mxu0 0.0
    %430 = vmatpush1.msra.mxu0 0.0
    %431 = vmatprep.subr.mxu0 0.0
    %432 = vmatpush1.msra.mxu0 0.0
    %433 = vmatprep.subr.mxu0 0.0
    %434 = vmatpush1.msra.mxu0 0.0
    %435 = vmatprep.subr.mxu0 0.0
    %436 = vmatpush1.msra.mxu0 0.0
    %437 = vmatprep.subr.mxu0 0.0
    %438 = vmatpush1.msra.mxu0 0.0
    %439 = vmatprep.subr.mxu0 0.0
    %440 = vmatpush1.msra.mxu0 0.0
    %441 = vmatprep.subr.mxu0 0.0
    %442 = vmatpush1.msra.mxu0 0.0
    %443 = vmatprep.subr.mxu0 0.0
    %444 = vmatpush1.msra.mxu0 0.0
    %445 = vmatprep.subr.mxu0 0.0
    %446 = vmatpush1.msra.mxu0 0.0
    %447 = vmatprep.subr.mxu0 0.0
    %448 = vmatpush1.msra.mxu0 0.0
    %449 = vmatprep.subr.mxu0 0.0
    %450 = vmatpush1.msra.mxu0 0.0
    %451 = vmatprep.subr.mxu0 0.0
    %452 = vmatpush1.msra.mxu0 0.0
    %453 = vmatprep.subr.mxu0 0.0
    %454 = vmatpush1.msra.mxu0 0.0
    %455 = vmatprep.subr.mxu0 0.0
    %456 = vmatpush1.msra.mxu0 0.0
    %457 = vmatprep.subr.mxu0 0.0
    %458 = vmatpush1.msra.mxu0 0.0
    %459 = vmatprep.subr.mxu0 0.0
    %460 = vmatpush1.msra.mxu0 0.0
    %461 = vmatprep.subr.mxu0 0.0
    %462 = vmatpush1.msra.mxu0 0.0
    %463 = vmatprep.subr.mxu0 0.0
    %464 = vmatpush1.msra.mxu0 0.0
    %465 = vmatprep.subr.mxu0 0.0
    %466 = vmatpush1.msra.mxu0 0.0
    %467 = vmatprep.subr.mxu0 0.0
    %468 = vmatpush1.msra.mxu0 0.0
    %469 = vmatprep.subr.mxu0 0.0
    %470 = vmatpush1.msra.mxu0 0.0
    %471 = vmatprep.subr.mxu0 0.0
    %472 = vmatpush1.msra.mxu0 0.0
    %473 = vmatprep.subr.mxu0 0.0
    %474 = vmatpush1.msra.mxu0 0.0
    %475 = vmatprep.subr.mxu0 0.0
    %476 = vmatpush1.msra.mxu0 0.0
    %477 = vmatprep.subr.mxu0 0.0
    %478 = vmatpush1.msra.mxu0 0.0
    %479 = vmatprep.mubr.f32.mxu0 0.0
    %480 = vmatmul.mubr.f32.gmra.mrb[0].mxu0 %v404
    %v481 = vpop.f32.mrb[0].mxu0
    %v482 = vadd.f32 0.0, %v481
    %v483 = vpop.f32.mrb[0].mxu0
    %484 = vmatprep.mubr.f32.mxu0 0.0
    %485 = vmatmul.mubr.f32.gmra.mrb[0].mxu0 %v407
    %v486 = vpop.f32.mrb[0].mxu0
    %v487 = vadd.f32 0.0, %v486
    %v488 = vpop.f32.mrb[0].mxu0
    %489 = vmatprep.mubr.f32.mxu0 0.0
    %490 = vmatmul.mubr.f32.gmra.mrb[0].mxu0 %v410
    %v491 = vpop.f32.mrb[0].mxu0
    %v492 = vadd.f32 0.0, %v491
    %v493 = vpop.f32.mrb[0].mxu0
    %494 = vmatprep.mubr.f32.mxu0 0.0
    %495 = vmatmul.mubr.f32.gmra.mrb[0].mxu0 %v413
    %v496 = vpop.f32.mrb[0].mxu0
    %v497 = vadd.f32 0.0, %v496
    %v498 = vpop.f32.mrb[0].mxu0
    %499 = vdwg.mxu0
    %s500 = sld [smem:[#allocation2 + $0x1]]
    %v501 = vstv %s500
    %v502 = vmul.f32 %v482, %v501
    %v503 = vmul.f32 %v487, %v501
    %v504 = vmul.f32 %v492, %v501
    %v505 = vmul.f32 %v497, %v501
    %s506 = sld [smem:[#allocation6 + $0x1]]
    %v507 = vstv %s506
    %v508 = vmul.f32 %v507, %v87
    %v509 = vmul.f32 %v507, %v88
    %v510 = vmul.f32 %v507, %v89
    %v511 = vmul.f32 %v507, %v90
    %v512 = vadd.f32 %v502, %v508
    %v513 = vadd.f32 %v503, %v509
    %v514 = vadd.f32 %v504, %v510
    %v515 = vadd.f32 %v505, %v511
    %s516 = scalar_lea.vmem [#allocation9], 32
    %517 = vst.msk [vmem:[%s516] sm:$0xff] %vm310, %v512
    %518 = vst.msk [vmem:[%s516 + $0x8] sm:$0xff] %vm310, %v513
    %519 = vst.msk [vmem:[%s516 + $0x10] sm:$0xff] %vm310, %v514
    %520 = vst.msk [vmem:[%s516 + $0x18] sm:$0xff] %vm310, %v515
    %s521 = scalar_lea.vmem %s2, 32
    %v522 = vld [vmem:[%s521] sm:$0xff]
    %v523 = vld [vmem:[%s521 + $0x8] sm:$0xff]
    %524 = vmatprep.subr.mxu0 0.0
    %525 = vmatpush1.msra.mxu0 %v522
    %526 = vmatprep.subr.mxu0 0.0
    %527 = vmatpush1.msra.mxu0 %v523
    %528 = vmatprep.subr.mxu0 0.0
    %529 = vmatpush1.msra.mxu0 0.0
    %530 = vmatprep.subr.mxu0 0.0
    %531 = vmatpush1.msra.mxu0 0.0
    %532 = vmatprep.subr.mxu0 0.0
    %533 = vmatpush1.msra.mxu0 0.0
    %534 = vmatprep.subr.mxu0 0.0
    %535 = vmatpush1.msra.mxu0 0.0
    %536 = vmatprep.subr.mxu0 0.0
    %537 = vmatpush1.msra.mxu0 0.0
    %538 = vmatprep.subr.mxu0 0.0
    %539 = vmatpush1.msra.mxu0 0.0
    %540 = vmatprep.subr.mxu0 0.0
    %541 = vmatpush1.msra.mxu0 0.0
    %542 = vmatprep.subr.mxu0 0.0
    %543 = vmatpush1.msra.mxu0 0.0
    %544 = vmatprep.subr.mxu0 0.0
    %545 = vmatpush1.msra.mxu0 0.0
    %546 = vmatprep.subr.mxu0 0.0
    %547 = vmatpush1.msra.mxu0 0.0
    %548 = vmatprep.subr.mxu0 0.0
    %549 = vmatpush1.msra.mxu0 0.0
    %550 = vmatprep.subr.mxu0 0.0
    %551 = vmatpush1.msra.mxu0 0.0
    %552 = vmatprep.subr.mxu0 0.0
    %553 = vmatpush1.msra.mxu0 0.0
    %554 = vmatprep.subr.mxu0 0.0
    %555 = vmatpush1.msra.mxu0 0.0
    %556 = vmatprep.subr.mxu0 0.0
    %557 = vmatpush1.msra.mxu0 0.0
    %558 = vmatprep.subr.mxu0 0.0
    %559 = vmatpush1.msra.mxu0 0.0
    %560 = vmatprep.subr.mxu0 0.0
    %561 = vmatpush1.msra.mxu0 0.0
    %562 = vmatprep.subr.mxu0 0.0
    %563 = vmatpush1.msra.mxu0 0.0
    %564 = vmatprep.subr.mxu0 0.0
    %565 = vmatpush1.msra.mxu0 0.0
    %566 = vmatprep.subr.mxu0 0.0
    %567 = vmatpush1.msra.mxu0 0.0
    %568 = vmatprep.subr.mxu0 0.0
    %569 = vmatpush1.msra.mxu0 0.0
    %570 = vmatprep.subr.mxu0 0.0
    %571 = vmatpush1.msra.mxu0 0.0
    %572 = vmatprep.subr.mxu0 0.0
    %573 = vmatpush1.msra.mxu0 0.0
    %574 = vmatprep.subr.mxu0 0.0
    %575 = vmatpush1.msra.mxu0 0.0
    %576 = vmatprep.subr.mxu0 0.0
    %577 = vmatpush1.msra.mxu0 0.0
    %578 = vmatprep.subr.mxu0 0.0
    %579 = vmatpush1.msra.mxu0 0.0
    %580 = vmatprep.subr.mxu0 0.0
    %581 = vmatpush1.msra.mxu0 0.0
    %582 = vmatprep.subr.mxu0 0.0
    %583 = vmatpush1.msra.mxu0 0.0
    %584 = vmatprep.subr.mxu0 0.0
    %585 = vmatpush1.msra.mxu0 0.0
    %586 = vmatprep.subr.mxu0 0.0
    %587 = vmatpush1.msra.mxu0 0.0
    %588 = vmatprep.mubr.f32.mxu0 0.0
    %589 = vmatmul.mubr.f32.gmra.mrb[0].mxu0 %v101
    %v590 = vpop.f32.mrb[0].mxu0
    %v591 = vadd.f32 0.0, %v590
    %v592 = vpop.f32.mrb[0].mxu0
    %593 = vmatprep.mubr.f32.mxu0 0.0
    %594 = vmatmul.mubr.f32.gmra.mrb[0].mxu0 %v104
    %v595 = vpop.f32.mrb[0].mxu0
    %v596 = vadd.f32 0.0, %v595
    %v597 = vpop.f32.mrb[0].mxu0
    %598 = vmatprep.mubr.f32.mxu0 0.0
    %599 = vmatmul.mubr.f32.gmra.mrb[0].mxu0 %v107
    %v600 = vpop.f32.mrb[0].mxu0
    %v601 = vadd.f32 0.0, %v600
    %v602 = vpop.f32.mrb[0].mxu0
    %603 = vmatprep.mubr.f32.mxu0 0.0
    %604 = vmatmul.mubr.f32.gmra.mrb[0].mxu0 %v110
    %v605 = vpop.f32.mrb[0].mxu0
    %v606 = vadd.f32 0.0, %v605
    %v607 = vpop.f32.mrb[0].mxu0
    %608 = vdwg.mxu0
    %v610 = vsel %vm99, %v591, 0
    %v613 = vsel %vm99, %v596, 0
    %v616 = vsel %vm99, %v601, 0
    %v619 = vsel %vm99, %v606, 0
    %621 = vmatprep.subr.mxu0 0.0
    %622 = vmatpush1.msra.mxu0 %v95
    %623 = vmatprep.subr.mxu0 0.0
    %624 = vmatpush1.msra.mxu0 %v96
    %625 = vmatprep.subr.mxu0 0.0
    %626 = vmatpush1.msra.mxu0 0.0
    %627 = vmatprep.subr.mxu0 0.0
    %628 = vmatpush1.msra.mxu0 0.0
    %629 = vmatprep.subr.mxu0 0.0
    %630 = vmatpush1.msra.mxu0 0.0
    %631 = vmatprep.subr.mxu0 0.0
    %632 = vmatpush1.msra.mxu0 0.0
    %633 = vmatprep.subr.mxu0 0.0
    %634 = vmatpush1.msra.mxu0 0.0
    %635 = vmatprep.subr.mxu0 0.0
    %636 = vmatpush1.msra.mxu0 0.0
    %637 = vmatprep.subr.mxu0 0.0
    %638 = vmatpush1.msra.mxu0 0.0
    %639 = vmatprep.subr.mxu0 0.0
    %640 = vmatpush1.msra.mxu0 0.0
    %641 = vmatprep.subr.mxu0 0.0
    %642 = vmatpush1.msra.mxu0 0.0
    %643 = vmatprep.subr.mxu0 0.0
    %644 = vmatpush1.msra.mxu0 0.0
    %645 = vmatprep.subr.mxu0 0.0
    %646 = vmatpush1.msra.mxu0 0.0
    %647 = vmatprep.subr.mxu0 0.0
    %648 = vmatpush1.msra.mxu0 0.0
    %649 = vmatprep.subr.mxu0 0.0
    %650 = vmatpush1.msra.mxu0 0.0
    %651 = vmatprep.subr.mxu0 0.0
    %652 = vmatpush1.msra.mxu0 0.0
    %653 = vmatprep.subr.mxu0 0.0
    %654 = vmatpush1.msra.mxu0 0.0
    %655 = vmatprep.subr.mxu0 0.0
    %656 = vmatpush1.msra.mxu0 0.0
    %657 = vmatprep.subr.mxu0 0.0
    %658 = vmatpush1.msra.mxu0 0.0
    %659 = vmatprep.subr.mxu0 0.0
    %660 = vmatpush1.msra.mxu0 0.0
    %661 = vmatprep.subr.mxu0 0.0
    %662 = vmatpush1.msra.mxu0 0.0
    %663 = vmatprep.subr.mxu0 0.0
    %664 = vmatpush1.msra.mxu0 0.0
    %665 = vmatprep.subr.mxu0 0.0
    %666 = vmatpush1.msra.mxu0 0.0
    %667 = vmatprep.subr.mxu0 0.0
    %668 = vmatpush1.msra.mxu0 0.0
    %669 = vmatprep.subr.mxu0 0.0
    %670 = vmatpush1.msra.mxu0 0.0
    %671 = vmatprep.subr.mxu0 0.0
    %672 = vmatpush1.msra.mxu0 0.0
    %673 = vmatprep.subr.mxu0 0.0
    %674 = vmatpush1.msra.mxu0 0.0
    %675 = vmatprep.subr.mxu0 0.0
    %676 = vmatpush1.msra.mxu0 0.0
    %677 = vmatprep.subr.mxu0 0.0
    %678 = vmatpush1.msra.mxu0 0.0
    %679 = vmatprep.subr.mxu0 0.0
    %680 = vmatpush1.msra.mxu0 0.0
    %681 = vmatprep.subr.mxu0 0.0
    %682 = vmatpush1.msra.mxu0 0.0
    %683 = vmatprep.subr.mxu0 0.0
    %684 = vmatpush1.msra.mxu0 0.0
    %685 = vmatprep.mubr.f32.mxu0 0.0
    %686 = vmatmul.mubr.f32.gmra.mrb[0].mxu0 %v610
    %v687 = vpop.f32.mrb[0].mxu0
    %v688 = vadd.f32 0.0, %v687
    %v689 = vpop.f32.mrb[0].mxu0
    %690 = vmatprep.mubr.f32.mxu0 0.0
    %691 = vmatmul.mubr.f32.gmra.mrb[0].mxu0 %v613
    %v692 = vpop.f32.mrb[0].mxu0
    %v693 = vadd.f32 0.0, %v692
    %v694 = vpop.f32.mrb[0].mxu0
    %695 = vmatprep.mubr.f32.mxu0 0.0
    %696 = vmatmul.mubr.f32.gmra.mrb[0].mxu0 %v616
    %v697 = vpop.f32.mrb[0].mxu0
    %v698 = vadd.f32 0.0, %v697
    %v699 = vpop.f32.mrb[0].mxu0
    %700 = vmatprep.mubr.f32.mxu0 0.0
    %701 = vmatmul.mubr.f32.gmra.mrb[0].mxu0 %v619
    %v702 = vpop.f32.mrb[0].mxu0
    %v703 = vadd.f32 0.0, %v702
    %v704 = vpop.f32.mrb[0].mxu0
    %705 = vdwg.mxu0
    %s706 = sld [smem:[#allocation2 + $0x2]]
    %v707 = vstv %s706
    %v708 = vmul.f32 %v688, %v707
    %v709 = vmul.f32 %v693, %v707
    %v710 = vmul.f32 %v698, %v707
    %v711 = vmul.f32 %v703, %v707
    %s712 = sld [smem:[#allocation6 + $0x2]]
    %v713 = vstv %s712
    %v714 = vmul.f32 %v713, %v87
    %v715 = vmul.f32 %v713, %v88
    %v716 = vmul.f32 %v713, %v89
    %v717 = vmul.f32 %v713, %v90
    %v718 = vadd.f32 %v708, %v714
    %v719 = vadd.f32 %v709, %v715
    %v720 = vadd.f32 %v710, %v716
    %v721 = vadd.f32 %v711, %v717
    %s722 = scalar_lea.vmem [#allocation9], 64
    %723 = vst.msk [vmem:[%s722] sm:$0xff] %vm310, %v718
    %724 = vst.msk [vmem:[%s722 + $0x8] sm:$0xff] %vm310, %v719
    %725 = vst.msk [vmem:[%s722 + $0x10] sm:$0xff] %vm310, %v720
    %726 = vst.msk [vmem:[%s722 + $0x18] sm:$0xff] %vm310, %v721
    // Predicated region
    $region34: #{tpu_custom_call.1} parent=1 // pred_check
      _
    $region35: #{tpu_custom_call.1} parent=1 // pred_check_branch
      %728 = sbr.rel (0) target = $region37
    $region36: #{tpu_custom_call.1} parent=1 // pred_region
      %s730 = ssub.s32 1536, 1536
      %731 = vsyncadd [#allocation4], %s730
      %s732 = sshll.u32 [#allocation9], 4
      %s733 = int_to_ptr.vmem [resolvable:$true] %s732
      %738 = dma.vmem_to_hbm [thread:$0]  %s733, 1536, %s6, [#allocation4], 128, 128, 8
    $region37: #{tpu_custom_call.1} parent=1 // pred_fallthru
      _
    // Predicated region
    $region38: #{tpu_custom_call.1} parent=1 // pred_check
      _
    $region39: #{tpu_custom_call.1} parent=1 // pred_check_branch
      %740 = sbr.rel (0) target = $region41
    $region40: #{tpu_custom_call.1} parent=1 // pred_region
      %741 = dma.done [#allocation4], 1536
    $region41: #{tpu_custom_call.1} parent=1 // pred_fallthru
      _
    %742 = vsyncpa [#allocation3], 1
    %743 = vsyncpa [#allocation4], 1
    %744 = vsyncpa [#allocation5], 1
    %745 = vsyncpa [#allocation7], 1

</llo_original>
